<compile_context>
chip_gen: v5e
topology: v5e:2x2
jax: 0.10.0
libtpu: 0.0.40
codegen_flags: <defaults>
</compile_context>

<pallas_src>
import functools

import jax
import jax.numpy as jnp
from jax import lax
from jax.experimental import pallas as pl
from jax.experimental.pallas import tpu as pltpu


def _cross_attention_kernel(
    src_ref,    # [S, D]    source_sequence (f32)
    tgt_ref,    # [T, D]    target_sequence (f32)
    w_ref,      # [D, 3D]   fused K|V|Q weight, pre-transposed (in,out); Q cols pre-scaled; bf16
    b_ref,      # [1, 3D]   fused K|V|Q bias (Q part pre-scaled), f32
    out_ref,    # [T, D]    context_vectors (f32)
    cat_ref,    # [S+T, D]  VMEM scratch (bf16) — staged src||tgt for one fused projection
    *,
    s_len,
    d_model,
):
    wdt = w_ref.dtype  # bf16

    # Stage src and tgt into one [S+T, D] operand -> single MXU push for all
    # three projections (wasted cross-term FLOPs are free at this size).
    cat_ref[:s_len, :] = src_ref[...].astype(wdt)
    cat_ref[s_len:, :] = tgt_ref[...].astype(wdt)

    proj = jnp.dot(cat_ref[...], w_ref[...],
                   preferred_element_type=jnp.float32) + b_ref[...]   # [S+T, 3D] f32

    # Lane/sublane-aligned static slices (128-wide column blocks, 8-row multiples).
    keys = proj[:s_len, :d_model]                     # [S, D]  (src rows, K cols)
    values = proj[:s_len, d_model:2 * d_model]        # [S, D]  (src rows, V cols)
    queries = proj[s_len:, 2 * d_model:]              # [T, D]  (tgt rows, Q cols, pre-scaled)

    # scores = Q @ K^T : contract last axis of both operands (MXU consumes the
    # transposed operand natively), bf16 operands, f32 accumulation.
    scores = lax.dot_general(
        queries.astype(wdt), keys.astype(wdt),
        dimension_numbers=(((1,), (1,)), ((), ())),
        preferred_element_type=jnp.float32,
    )  # [T, S]

    # Numerically-stable softmax over the source axis, all f32, exact divide.
    m = jnp.max(scores, axis=-1, keepdims=True)
    e = jnp.exp(scores - m)
    denom = jnp.sum(e, axis=-1, keepdims=True)
    weights = e / denom

    # context_vectors = attn_weights @ V  (bf16 operands, f32 accumulate).
    out = jnp.dot(weights.astype(wdt), values.astype(wdt),
                  preferred_element_type=jnp.float32)
    out_ref[...] = out.astype(out_ref.dtype)


def prepare_params(params, *, param_dtype=jnp.bfloat16):
    """One-time parameter preparation (module-__init__ equivalent).

    - Transposes nn.Linear (out,in) weights to (in,out) so the kernel does x @ W.
    - Fuses K, V and Q into one [D, 3D] weight and one [1, 3D] bias.
    - Folds the 1/sqrt(D) attention scale into the Q projection.
    - Casts weights to bf16 (half the weight DMA bytes, native MXU dtype);
      biases stay f32 and are added after the f32-accumulating matmul.
    """
    D = params["wk"].shape[0]
    inv_scale = 1.0 / (float(D) ** 0.5)
    w = jnp.concatenate(
        [params["wk"].T, params["wv"].T, params["wq"].T * inv_scale], axis=1
    ).astype(param_dtype)                                            # [D, 3D]
    b = jnp.concatenate(
        [params["bk"], params["bv"], params["bq"] * inv_scale]
    ).reshape(1, 3 * D).astype(jnp.float32)                          # [1, 3D]
    return {"w": w, "b": b}


@jax.jit
def cross_attention_learnable(source_sequence, target_sequence, prepared):
    """JAX/Pallas equivalent of CrossAttentionLearnable.forward.

    Args:
      source_sequence: [source_len, embedding_dim] f32
      target_sequence: [target_len, embedding_dim] f32
      prepared: output of `prepare_params` (one-time prep of nn.Linear params)
    Returns:
      context_vectors: [target_len, embedding_dim] f32
    """
    S, D = source_sequence.shape
    T, Dt = target_sequence.shape
    assert D == Dt

    kernel = functools.partial(_cross_attention_kernel, s_len=S, d_model=D)
    full = lambda shape: pl.BlockSpec(shape, lambda: tuple(0 for _ in shape))

    return pl.pallas_call(
        kernel,
        out_shape=jax.ShapeDtypeStruct((T, D), jnp.float32),
        grid=(),
        in_specs=[
            full((S, D)),          # source
            full((T, D)),          # target
            full((D, 3 * D)),      # fused K|V|Q weight (bf16)
            full((1, 3 * D)),      # fused K|V|Q bias (f32)
        ],
        out_specs=full((T, D)),
        scratch_shapes=[pltpu.VMEM((S + T, D), prepared["w"].dtype)],
    )(source_sequence, target_sequence, prepared["w"], prepared["b"])


def _reference_f32(src, tgt, params):
    """Pure-f32 reference, literal translation of the PyTorch module."""
    D = src.shape[-1]
    keys = src @ params["wk"].T + params["bk"]
    queries = tgt @ params["wq"].T + params["bq"]
    values = src @ params["wv"].T + params["bv"]
    scores = queries @ keys.T / (D ** 0.5)
    weights = jax.nn.softmax(scores, axis=-1)
    return weights @ values


def _reference_prepared(src, tgt, prepared):
    """Reference that mirrors the kernel's math op-for-op (same dtypes/order)."""
    wdt = prepared["w"].dtype
    S, D = src.shape
    x = jnp.concatenate([src, tgt], axis=0).astype(wdt)
    proj = jnp.dot(x, prepared["w"], preferred_element_type=jnp.float32) + prepared["b"]
    keys = proj[:S, :D]
    values = proj[:S, D:2 * D]
    queries = proj[S:, 2 * D:]
    scores = jnp.dot(queries.astype(wdt), keys.astype(wdt).T,
                     preferred_element_type=jnp.float32)
    weights = jax.nn.softmax(scores, axis=-1)
    return jnp.dot(weights.astype(wdt), values.astype(wdt),
                   preferred_element_type=jnp.float32)


if __name__ == "__main__":
    embedding_dim = 128
    source_len = 16
    target_len = 8

    key = jax.random.PRNGKey(0)
    k_src, k_tgt, k_wk, k_bk, k_wq, k_bq, k_wv, k_bv = jax.random.split(key, 8)

    source_sequence = jax.random.normal(k_src, (source_len, embedding_dim), jnp.float32)
    target_sequence = jax.random.normal(k_tgt, (target_len, embedding_dim), jnp.float32)

    # Deterministic nn.Linear-style params (uniform(-1/sqrt(D), 1/sqrt(D))).
    bound = 1.0 / (embedding_dim ** 0.5)
    params = {
        "wk": jax.random.uniform(k_wk, (embedding_dim, embedding_dim), jnp.float32, -bound, bound),
        "bk": jax.random.uniform(k_bk, (embedding_dim,), jnp.float32, -bound, bound),
        "wq": jax.random.uniform(k_wq, (embedding_dim, embedding_dim), jnp.float32, -bound, bound),
        "bq": jax.random.uniform(k_bq, (embedding_dim,), jnp.float32, -bound, bound),
        "wv": jax.random.uniform(k_wv, (embedding_dim, embedding_dim), jnp.float32, -bound, bound),
        "bv": jax.random.uniform(k_bv, (embedding_dim,), jnp.float32, -bound, bound),
    }

    # One-time parameter preparation (hoisted out of the per-call path).
    prepared = jax.tree_util.tree_map(jax.block_until_ready, prepare_params(params))

    out = cross_attention_learnable(source_sequence, target_sequence, prepared)
    out = jax.block_until_ready(out)
    assert out.shape == (target_len, embedding_dim)

    # Tight check vs a pure-JAX reference that mirrors the kernel's exact
    # precision recipe (isolates kernel correctness from quantization choices).
    ref_matched = _reference_prepared(source_sequence, target_sequence, prepared)
    assert jnp.allclose(out, ref_matched, atol=1e-3, rtol=1e-3), \
        f"mismatch vs matched-precision reference: {jnp.max(jnp.abs(out - ref_matched))}"

    # Loose check vs the full-f32 PyTorch-equivalent reference (only difference
    # is the bf16 weight/operand quantization on the MXU).
    ref_f32 = _reference_f32(source_sequence, target_sequence, params)
    assert jnp.allclose(out, ref_f32, atol=5e-2, rtol=5e-2), \
        f"mismatch vs f32 reference: {jnp.max(jnp.abs(out - ref_f32))}"

    print("KERNEL_OK")
</pallas_src>

<mosaic_0001>
module attributes {stable_mosaic.version = 11 : i64} {
  func.func @_cross_attention_kernel(%arg0: memref<16x128xf32, #tpu.memory_space<vmem>>, %arg1: memref<8x128xf32, #tpu.memory_space<vmem>>, %arg2: memref<128x384xbf16, #tpu.memory_space<vmem>>, %arg3: memref<1x384xf32, #tpu.memory_space<vmem>>, %arg4: memref<8x128xf32, #tpu.memory_space<vmem>>, %arg5: memref<24x128xbf16, #tpu.memory_space<vmem>>) attributes {dimension_semantics = [], scalar_prefetch = 0 : i64, scratch_operands = 1 : i64, tpu.core_type = #tpu.core_type<tc>} {
    %c0 = arith.constant 0 : index
    %c0_0 = arith.constant 0 : index
    %0 = vector.load %arg0[%c0, %c0_0] : memref<16x128xf32, #tpu.memory_space<vmem>>, vector<16x128xf32>
    %1 = arith.truncf %0 : vector<16x128xf32> to vector<16x128xbf16>
    %c0_1 = arith.constant 0 : index
    %c0_2 = arith.constant 0 : index
    %2 = vector.load %arg5[%c0_1, %c0_2] : memref<24x128xbf16, #tpu.memory_space<vmem>>, vector<16x128xbf16>
    tpu.vector_store %arg5[%c0_1, %c0_2], %1 {strides = array<i32>} : memref<24x128xbf16, #tpu.memory_space<vmem>>, vector<16x128xbf16>,
    %c0_3 = arith.constant 0 : index
    %c0_4 = arith.constant 0 : index
    %3 = vector.load %arg1[%c0_3, %c0_4] : memref<8x128xf32, #tpu.memory_space<vmem>>, vector<8x128xf32>
    %4 = arith.truncf %3 : vector<8x128xf32> to vector<8x128xbf16>
    %c16 = arith.constant 16 : index
    %c0_5 = arith.constant 0 : index
    %5 = vector.load %arg5[%c16, %c0_5] : memref<24x128xbf16, #tpu.memory_space<vmem>>, vector<8x128xbf16>
    tpu.vector_store %arg5[%c16, %c0_5], %4 {strides = array<i32>} : memref<24x128xbf16, #tpu.memory_space<vmem>>, vector<8x128xbf16>,
    %c0_6 = arith.constant 0 : index
    %c0_7 = arith.constant 0 : index
    %6 = vector.load %arg5[%c0_6, %c0_7] : memref<24x128xbf16, #tpu.memory_space<vmem>>, vector<24x128xbf16>
    %c0_8 = arith.constant 0 : index
    %c0_9 = arith.constant 0 : index
    %7 = vector.load %arg2[%c0_8, %c0_9] : memref<128x384xbf16, #tpu.memory_space<vmem>>, vector<128x384xbf16>
    %cst = arith.constant dense<0.000000e+00> : vector<24x384xf32>
    %8 = tpu.matmul %6, %7, %cst {dimension_numbers = #tpu.dot_dimension_numbers<[1], [0], [0], [1], [0, 0, 1, 1], [], []>} : vector<24x128xbf16>, vector<128x384xbf16>, vector<24x384xf32> -> vector<24x384xf32>
    %c0_10 = arith.constant 0 : index
    %c0_11 = arith.constant 0 : index
    %9 = vector.load %arg3[%c0_10, %c0_11] : memref<1x384xf32, #tpu.memory_space<vmem>>, vector<1x384xf32>
    %10 = vector.broadcast %9 : vector<1x384xf32> to vector<24x384xf32>
    %11 = arith.addf %8, %10 : vector<24x384xf32>
    %12 = vector.extract_strided_slice %11 {offsets = [0, 0], sizes = [16, 128], strides = [1, 1]} : vector<24x384xf32> to vector<16x128xf32>
    %13 = vector.extract_strided_slice %11 {offsets = [0, 128], sizes = [16, 128], strides = [1, 1]} : vector<24x384xf32> to vector<16x128xf32>
    %14 = vector.extract_strided_slice %11 {offsets = [16, 256], sizes = [8, 128], strides = [1, 1]} : vector<24x384xf32> to vector<8x128xf32>
    %15 = arith.truncf %14 : vector<8x128xf32> to vector<8x128xbf16>
    %16 = arith.truncf %12 : vector<16x128xf32> to vector<16x128xbf16>
    %cst_12 = arith.constant dense<0.000000e+00> : vector<8x16xf32>
    %17 = tpu.matmul %15, %16, %cst_12 {dimension_numbers = #tpu.dot_dimension_numbers<[1], [1], [0], [0], [0, 0, 1, 0], [], []>} : vector<8x128xbf16>, vector<16x128xbf16>, vector<8x16xf32> -> vector<8x16xf32>
    %cst_13 = arith.constant dense<0xFF800000> : vector<8xf32>
    %18 = vector.multi_reduction <maximumf>, %17, %cst_13 [1] : vector<8x16xf32> to vector<8xf32>
    %19 = vector.shape_cast %18 : vector<8xf32> to vector<8x1xf32>
    %20 = vector.broadcast %19 : vector<8x1xf32> to vector<8x16xf32>
    %21 = arith.subf %17, %20 : vector<8x16xf32>
    %22 = math.exp %21 : vector<8x16xf32>
    %cst_14 = arith.constant dense<0.000000e+00> : vector<8xf32>
    %23 = vector.multi_reduction <add>, %22, %cst_14 [1] : vector<8x16xf32> to vector<8xf32>
    %24 = vector.shape_cast %23 : vector<8xf32> to vector<8x1xf32>
    %25 = vector.broadcast %24 : vector<8x1xf32> to vector<8x16xf32>
    %26 = arith.divf %22, %25 : vector<8x16xf32>
    %27 = arith.truncf %26 : vector<8x16xf32> to vector<8x16xbf16>
    %28 = arith.truncf %13 : vector<16x128xf32> to vector<16x128xbf16>
    %cst_15 = arith.constant dense<0.000000e+00> : vector<8x128xf32>
    %29 = tpu.matmul %27, %28, %cst_15 {dimension_numbers = #tpu.dot_dimension_numbers<[1], [0], [0], [1], [0, 0, 1, 1], [], []>} : vector<8x16xbf16>, vector<16x128xbf16>, vector<8x128xf32> -> vector<8x128xf32>
    %c0_16 = arith.constant 0 : index
    %c0_17 = arith.constant 0 : index
    %30 = vector.load %arg4[%c0_16, %c0_17] : memref<8x128xf32, #tpu.memory_space<vmem>>, vector<8x128xf32>
    tpu.vector_store %arg4[%c0_16, %c0_17], %29 {strides = array<i32>} : memref<8x128xf32, #tpu.memory_space<vmem>>, vector<8x128xf32>,
    return
  }
}

</mosaic_0001>

<llo_original>
// kernel: cross_attention_learnable.1
$region0: #{cross_attention_learnable.1}
  #allocation0 [shape = 'u32[]', space=smem, size = 0x4, offset = 0x4, fixed_abs, tag = 'smem constant byte address 0x4 - core index']
  #allocation1 [shape = 'u32[72,128]{1,0:T(1,128)}', space=vmem, size = 0x9000, scoped, tag = 'internal scratch']
  #allocation2 [shape = 'bf16[24,128]{1,0:T(8,128)(2,1)}', space=vmem, size = 0x1800, scoped, tag = 'scratch operand']
  %s0 = inlined_call_operand.hbm [shape: f32[16,128], index: 0, kind: input, shape index: {}]
  %s1 = inlined_call_operand.hbm [shape: f32[8,128], index: 1, kind: input, shape index: {}]
  %s2 = inlined_call_operand.hbm [shape: bf16[128,384], index: 2, kind: input, shape index: {}]
  %s3 = inlined_call_operand.hbm [shape: f32[1,384], index: 3, kind: input, shape index: {}]
  %s4 = inlined_call_operand.hbm [shape: f32[8,128], index: 4, kind: output, shape index: {}]
  %s5 = sld [smem:[#allocation0]]
  $region42: #{cross_attention_learnable.1} parent=0
    _
  %s7 = ssub.s32 1, %s5
  %s8 = scalar_select 0, %s7, %s5
  $region1: #{cross_attention_learnable.1} parent=0
    #allocation3 [shape = 'u8[8192]{0}', space=vmem, size = 0x2000, scoped, tag = 'input window, operand 0, single buffered']
    #allocation4 [shape = 's32[1]{0}', space=sflag, size = 0x4, scoped, tag = 'scoped memory for cross_attention_learnable.1']
    #allocation5 [shape = 's32[1]{0}', space=sflag, size = 0x4, scoped, tag = 'scoped memory for cross_attention_learnable.1']
    #allocation6 [shape = 'u8[4096]{0}', space=vmem, size = 0x1000, scoped, tag = 'input window, operand 1, single buffered']
    #allocation7 [shape = 's32[1]{0}', space=sflag, size = 0x4, scoped, tag = 'scoped memory for cross_attention_learnable.1']
    #allocation8 [shape = 'u8[98304]{0}', space=vmem, size = 0x18000, scoped, tag = 'input window, operand 2, single buffered']
    #allocation9 [shape = 'u8[1536]{0}', space=vmem, size = 0x800, scoped, tag = 'input window, operand 3, single buffered']
    #allocation10 [shape = 's32[1]{0}', space=sflag, size = 0x4, scoped, tag = 'scoped memory for cross_attention_learnable.1']
    #allocation11 [shape = 'u8[4096]{0}', space=vmem, size = 0x1000, scoped, tag = 'output window, operand 0, single buffered']
    %9 = vsyncpa [#allocation4], 0
    %10 = vsyncpa [#allocation7], 0
    %11 = vsyncpa [#allocation10], 0
    %12 = vsyncpa [#allocation5], 0
    // Predicated region
    $region2: #{cross_attention_learnable.1} parent=1 // pred_check
      _
    $region3: #{cross_attention_learnable.1} parent=1 // pred_check_branch
      %14 = sbr.rel (0) target = $region5
    $region4: #{cross_attention_learnable.1} parent=1 // pred_region
      %16 = vsyncadd [#allocation4], 0
      %s17 = sshll.u32 %s0, 4
      %s18 = int_to_ptr.hbm [resolvable:$true] %s17
      %s19 = sshll.u32 [#allocation3], 4
      %s20 = int_to_ptr.vmem [resolvable:$true] %s19
      %25 = dma.hbm_to_vmem [thread:$0]  %s18, 256, %s20, [#allocation4], 128, 128, 8
    $region5: #{cross_attention_learnable.1} parent=1 // pred_fallthru
      _
    // Predicated region
    $region6: #{cross_attention_learnable.1} parent=1 // pred_check
      _
    $region7: #{cross_attention_learnable.1} parent=1 // pred_check_branch
      %27 = sbr.rel (0) target = $region9
    $region8: #{cross_attention_learnable.1} parent=1 // pred_region
      %29 = vsyncadd [#allocation7], 0
      %s31 = sshll.u32 %s1, 4
      %s32 = int_to_ptr.hbm [resolvable:$true] %s31
      %s33 = sshll.u32 [#allocation6], 4
      %s34 = int_to_ptr.vmem [resolvable:$true] %s33
      %36 = dma.hbm_to_vmem [thread:$0]  %s32, 128, %s34, [#allocation7]
    $region9: #{cross_attention_learnable.1} parent=1 // pred_fallthru
      _
    // Predicated region
    $region10: #{cross_attention_learnable.1} parent=1 // pred_check
      _
    $region11: #{cross_attention_learnable.1} parent=1 // pred_check_branch
      %38 = sbr.rel (0) target = $region13
    $region12: #{cross_attention_learnable.1} parent=1 // pred_region
      %40 = vsyncadd [#allocation7], 0
      %s41 = sshll.u32 %s2, 4
      %s42 = int_to_ptr.hbm [resolvable:$true] %s41
      %s43 = sshll.u32 [#allocation8], 4
      %s44 = int_to_ptr.vmem [resolvable:$true] %s43
      %49 = dma.hbm_to_vmem [thread:$0]  %s42, 3072, %s44, [#allocation7], 192, 192, 12
    $region13: #{cross_attention_learnable.1} parent=1 // pred_fallthru
      _
    // Predicated region
    $region14: #{cross_attention_learnable.1} parent=1 // pred_check
      _
    $region15: #{cross_attention_learnable.1} parent=1 // pred_check_branch
      %51 = sbr.rel (0) target = $region17
    $region16: #{cross_attention_learnable.1} parent=1 // pred_region
      %53 = vsyncadd [#allocation10], 0
      %s55 = sshll.u32 %s3, 4
      %s56 = int_to_ptr.hbm [resolvable:$true] %s55
      %s57 = sshll.u32 [#allocation9], 4
      %s58 = int_to_ptr.vmem [resolvable:$true] %s57
      %60 = dma.hbm_to_vmem [thread:$0]  %s56, 48, %s58, [#allocation10]
    $region17: #{cross_attention_learnable.1} parent=1 // pred_fallthru
      _
    // Predicated region
    $region18: #{cross_attention_learnable.1} parent=1 // pred_check
      _
    $region19: #{cross_attention_learnable.1} parent=1 // pred_check_branch
      %62 = sbr.rel (0) target = $region21
    $region20: #{cross_attention_learnable.1} parent=1 // pred_region
      %64 = dma.done [#allocation4], 256
    $region21: #{cross_attention_learnable.1} parent=1 // pred_fallthru
      _
    // Predicated region
    $region22: #{cross_attention_learnable.1} parent=1 // pred_check
      _
    $region23: #{cross_attention_learnable.1} parent=1 // pred_check_branch
      %66 = sbr.rel (0) target = $region25
    $region24: #{cross_attention_learnable.1} parent=1 // pred_region
      %68 = dma.done [#allocation7], 128
    $region25: #{cross_attention_learnable.1} parent=1 // pred_fallthru
      _
    // Predicated region
    $region26: #{cross_attention_learnable.1} parent=1 // pred_check
      _
    $region27: #{cross_attention_learnable.1} parent=1 // pred_check_branch
      %70 = sbr.rel (0) target = $region29
    $region28: #{cross_attention_learnable.1} parent=1 // pred_region
      %72 = dma.done [#allocation7], 3072
    $region29: #{cross_attention_learnable.1} parent=1 // pred_fallthru
      _
    // Predicated region
    $region30: #{cross_attention_learnable.1} parent=1 // pred_check
      _
    $region31: #{cross_attention_learnable.1} parent=1 // pred_check_branch
      %74 = sbr.rel (0) target = $region33
    $region32: #{cross_attention_learnable.1} parent=1 // pred_region
      %76 = dma.done [#allocation10], 48
    $region33: #{cross_attention_learnable.1} parent=1 // pred_fallthru
      _
    %v78 = vld [vmem:[#allocation3] sm:$0xff]
    %v79 = vld [vmem:[#allocation3 + $0x8] sm:$0xff]
    %v80 = vpack.c.bf16 %v78, %v78
    %v81 = vpack.c.bf16 %v79, %v79
    %82 = vst [vmem:[#allocation2] sm:$0xf] %v80
    %83 = vst [vmem:[#allocation2 + $0x4] sm:$0xf] %v81
    %v84 = vld [vmem:[#allocation6] sm:$0xff]
    %v85 = vpack.c.bf16 %v84, %v84
    %86 = vst [vmem:[#allocation2 + $0x8] sm:$0xf] %v85
    %v87 = vld [vmem:[#allocation2] sm:$0xf]
    %v88 = vld [vmem:[#allocation2 + $0x4] sm:$0xf]
    %v89 = vld [vmem:[#allocation2 + $0x8] sm:$0xf]
    %v90 = vld [vmem:[#allocation8] sm:$0xff]
    %v91 = vld [vmem:[#allocation8 + $0x8] sm:$0xf]
    %v92 = vld [vmem:[#allocation8 + $0xc] sm:$0xff]
    %v93 = vld [vmem:[#allocation8 + $0x14] sm:$0xf]
    %v94 = vld [vmem:[#allocation8 + $0x18] sm:$0xff]
    %v95 = vld [vmem:[#allocation8 + $0x20] sm:$0xf]
    %v96 = vld [vmem:[#allocation8 + $0x24] sm:$0xff]
    %v97 = vld [vmem:[#allocation8 + $0x2c] sm:$0xf]
    %v98 = vld [vmem:[#allocation8 + $0x30] sm:$0xff]
    %v99 = vld [vmem:[#allocation8 + $0x38] sm:$0xf]
    %v100 = vld [vmem:[#allocation8 + $0x3c] sm:$0xff]
    %v101 = vld [vmem:[#allocation8 + $0x44] sm:$0xf]
    %v102 = vld [vmem:[#allocation8 + $0x48] sm:$0xff]
    %v103 = vld [vmem:[#allocation8 + $0x50] sm:$0xf]
    %v104 = vld [vmem:[#allocation8 + $0x54] sm:$0xff]
    %v105 = vld [vmem:[#allocation8 + $0x5c] sm:$0xf]
    %v106 = vld [vmem:[#allocation8 + $0x60] sm:$0xff]
    %v107 = vld [vmem:[#allocation8 + $0x68] sm:$0xf]
    %v108 = vld [vmem:[#allocation8 + $0x6c] sm:$0xff]
    %v109 = vld [vmem:[#allocation8 + $0x74] sm:$0xf]
    %v110 = vld [vmem:[#allocation8 + $0x78] sm:$0xff]
    %v111 = vld [vmem:[#allocation8 + $0x80] sm:$0xf]
    %v112 = vld [vmem:[#allocation8 + $0x84] sm:$0xff]
    %v113 = vld [vmem:[#allocation8 + $0x8c] sm:$0xf]
    %v114 = vld [vmem:[#allocation8 + $0x90] sm:$0xff]
    %v115 = vld [vmem:[#allocation8 + $0x98] sm:$0xf]
    %v116 = vld [vmem:[#allocation8 + $0x9c] sm:$0xff]
    %v117 = vld [vmem:[#allocation8 + $0xa4] sm:$0xf]
    %v118 = vld [vmem:[#allocation8 + $0xa8] sm:$0xff]
    %v119 = vld [vmem:[#allocation8 + $0xb0] sm:$0xf]
    %v120 = vld [vmem:[#allocation8 + $0xb4] sm:$0xff]
    %v121 = vld [vmem:[#allocation8 + $0xbc] sm:$0xf]
    %v122 = vld [vmem:[#allocation9] sm:$0x7]
    %v124 = vperm.slane %v122, 0
    %v125 = vperm.slane %v122, 1
    %v126 = vperm.slane %v122, 2
    %v133 = vunpack.c.l.b16 %v87
    %v134 = vunpack.c.l.b16 %v88
    %v135 = vunpack.c.l.b16 %v89
    %v136 = vpack.c.b16 %v134, %v133
    %v137 = vpack.c.b16 %v135, %v135
    %v172 = vunpack.c.l.b16 %v90
    %v173 = vunpack.c.h.b16 %v90
    %v174 = vunpack.c.l.b16 %v91
    %v175 = vunpack.c.l.b16 %v92
    %v176 = vunpack.c.h.b16 %v92
    %v177 = vunpack.c.l.b16 %v93
    %v178 = vunpack.c.l.b16 %v94
    %v179 = vunpack.c.h.b16 %v94
    %v180 = vunpack.c.l.b16 %v95
    %v181 = vunpack.c.l.b16 %v96
    %v182 = vunpack.c.h.b16 %v96
    %v183 = vunpack.c.l.b16 %v97
    %v184 = vunpack.c.l.b16 %v98
    %v185 = vunpack.c.h.b16 %v98
    %v186 = vunpack.c.l.b16 %v99
    %v187 = vunpack.c.l.b16 %v100
    %v188 = vunpack.c.h.b16 %v100
    %v189 = vunpack.c.l.b16 %v101
    %v190 = vunpack.c.l.b16 %v102
    %v191 = vunpack.c.h.b16 %v102
    %v192 = vunpack.c.l.b16 %v103
    %v193 = vunpack.c.l.b16 %v104
    %v194 = vunpack.c.h.b16 %v104
    %v195 = vunpack.c.l.b16 %v105
    %v196 = vunpack.c.l.b16 %v106
    %v197 = vunpack.c.h.b16 %v106
    %v198 = vunpack.c.l.b16 %v107
    %v199 = vunpack.c.l.b16 %v108
    %v200 = vunpack.c.h.b16 %v108
    %v201 = vunpack.c.l.b16 %v109
    %v202 = vunpack.c.l.b16 %v110
    %v203 = vunpack.c.h.b16 %v110
    %v204 = vunpack.c.l.b16 %v111
    %v205 = vunpack.c.l.b16 %v112
    %v206 = vunpack.c.h.b16 %v112
    %v207 = vunpack.c.l.b16 %v113
    %v208 = vunpack.c.l.b16 %v114
    %v209 = vunpack.c.h.b16 %v114
    %v210 = vunpack.c.l.b16 %v115
    %v211 = vunpack.c.l.b16 %v116
    %v212 = vunpack.c.h.b16 %v116
    %v213 = vunpack.c.l.b16 %v117
    %v214 = vunpack.c.l.b16 %v118
    %v215 = vunpack.c.h.b16 %v118
    %v216 = vunpack.c.l.b16 %v119
    %v217 = vunpack.c.l.b16 %v120
    %v218 = vunpack.c.h.b16 %v120
    %v219 = vunpack.c.l.b16 %v121
    %v220 = vpack.c.b16 %v175, %v172
    %v221 = vpack.c.b16 %v176, %v173
    %v222 = vpack.c.b16 %v177, %v174
    %v223 = vpack.c.b16 %v181, %v178
    %v224 = vpack.c.b16 %v182, %v179
    %v225 = vpack.c.b16 %v183, %v180
    %v226 = vpack.c.b16 %v187, %v184
    %v227 = vpack.c.b16 %v188, %v185
    %v228 = vpack.c.b16 %v189, %v186
    %v229 = vpack.c.b16 %v193, %v190
    %v230 = vpack.c.b16 %v194, %v191
    %v231 = vpack.c.b16 %v195, %v192
    %v232 = vpack.c.b16 %v199, %v196
    %v233 = vpack.c.b16 %v200, %v197
    %v234 = vpack.c.b16 %v201, %v198
    %v235 = vpack.c.b16 %v205, %v202
    %v236 = vpack.c.b16 %v206, %v203
    %v237 = vpack.c.b16 %v207, %v204
    %v238 = vpack.c.b16 %v211, %v208
    %v239 = vpack.c.b16 %v212, %v209
    %v240 = vpack.c.b16 %v213, %v210
    %v241 = vpack.c.b16 %v217, %v214
    %v242 = vpack.c.b16 %v218, %v215
    %v243 = vpack.c.b16 %v219, %v216
    %268 = vmatpush.bf16.msra.mxu0 %v241
    %269 = vmatpush.bf16.msra.mxu0 %v238
    %270 = vmatpush.bf16.msra.mxu0 %v235
    %271 = vmatpush.bf16.msra.mxu0 %v232
    %272 = vmatpush.bf16.msra.mxu0 %v229
    %273 = vmatpush.bf16.msra.mxu0 %v226
    %274 = vmatpush.bf16.msra.mxu0 %v223
    %275 = vmatpush.bf16.msra.mxu0 %v220
    %276 = vmatmul.bf16.gmra.mxu0 %v136
    %v277 = vpop.f32.mrf.mxu0
    %v278 = vadd.f32 %v124, %v277
    %v279 = vpop.f32.mrf.mxu0
    %v280 = vadd.f32 %v124, %v279
    %281 = vmatmul.bf16.gmra.mxu0 %v137
    %v282 = vpop.f32.mrf.mxu0
    %v283 = vpop.f32.mrf.mxu0
    %284 = vdwg.mxu0
    %285 = vmatpush.bf16.msra.mxu0 %v242
    %286 = vmatpush.bf16.msra.mxu0 %v239
    %287 = vmatpush.bf16.msra.mxu0 %v236
    %288 = vmatpush.bf16.msra.mxu0 %v233
    %289 = vmatpush.bf16.msra.mxu0 %v230
    %290 = vmatpush.bf16.msra.mxu0 %v227
    %291 = vmatpush.bf16.msra.mxu0 %v224
    %292 = vmatpush.bf16.msra.mxu0 %v221
    %293 = vmatmul.bf16.gmra.mxu0 %v136
    %v294 = vpop.f32.mrf.mxu0
    %v295 = vadd.f32 %v125, %v294
    %v296 = vpop.f32.mrf.mxu0
    %v297 = vadd.f32 %v125, %v296
    %298 = vmatmul.bf16.gmra.mxu0 %v137
    %v299 = vpop.f32.mrf.mxu0
    %v300 = vpop.f32.mrf.mxu0
    %301 = vdwg.mxu0
    %302 = vmatpush.bf16.msra.mxu0 %v243
    %303 = vmatpush.bf16.msra.mxu0 %v240
    %304 = vmatpush.bf16.msra.mxu0 %v237
    %305 = vmatpush.bf16.msra.mxu0 %v234
    %306 = vmatpush.bf16.msra.mxu0 %v231
    %307 = vmatpush.bf16.msra.mxu0 %v228
    %308 = vmatpush.bf16.msra.mxu0 %v225
    %309 = vmatpush.bf16.msra.mxu0 %v222
    %310 = vmatmul.bf16.gmra.mxu0 %v136
    %v311 = vpop.f32.mrf.mxu0
    %v312 = vpop.f32.mrf.mxu0
    %313 = vmatmul.bf16.gmra.mxu0 %v137
    %v314 = vpop.f32.mrf.mxu0
    %v315 = vadd.f32 %v126, %v314
    %v316 = vpop.f32.mrf.mxu0
    %317 = vdwg.mxu0
    %v318 = vpack.c.bf16 %v315, %v315
    %v319 = vpack.c.bf16 %v280, %v278
    %320 = vmatpush.bf16.xpose.msra.mxu0 0
    %321 = vmatpush.bf16.xpose.msra.mxu0 0
    %322 = vmatpush.bf16.xpose.msra.mxu0 0
    %323 = vmatpush.bf16.xpose.msra.mxu0 0
    %324 = vmatpush.bf16.xpose.msra.mxu0 0
    %325 = vmatpush.bf16.xpose.msra.mxu0 0
    %326 = vmatpush.bf16.xpose.msra.mxu0 0
    %327 = vmatpush.bf16.xpose.msra.mxu0 %v319
    %328 = vmatmul.bf16.gmra.mxu0 %v318
    %v329 = vpop.f32.mrf.mxu0
    %v330 = vadd.f32 0.0, %v329
    %v331 = vpop.f32.mrf.mxu0
    %332 = vdwg.mxu0
    %vm333 = vcmask 130048
    %v334 = vsel %vm333, %v330, -inf
    %335 = vmax.xlane.f32.xlu0 %v334
    %v336 = vpop.xlane.xlu0 %335
    %v337 = vsub.f32 %v330, %v336
    %v338 = vmul.f32 %v337, 1.442695
    %v339 = vpow.pop %v338
    %v340 = vsel %vm333, %v339, 0.0
    %341 = vadd.xlane.f32.xlu0 %v340
    %v342 = vpop.xlane.xlu0 %341
    %v343 = vrcp.pop %v342
    %v344 = vmul.f32 %v342, %v343
    %v345 = vsub.f32 1.0, %v344
    %v346 = vmul.f32 %v343, %v345
    %v347 = vadd.f32 %v343, %v346
    %vm348 = vweird.f32 %v342
    %vm349 = vweird.f32 %v343
    %vm350 = vmor %vm348, %vm349
    %v351 = vsel %vm350, %v343, %v347
    %v352 = vand.u32 2147483647, %v342
    %vm353 = vcmp.eq.f32.partialorder %v352, 8.507059e+37
    %v354 = vand.u32 %v342, 2147483648
    %v355 = vor.u32 1.1754944e-38, %v354
    %v356 = vsel %vm353, %v355, %v351
    %v357 = vmul.f32 %v339, %v356
    %v358 = vpack.c.bf16 %v357, %v357
    %v359 = vpack.c.bf16 %v297, %v295
    %v361 = vsel %vm333, %v358, 0
    %363 = vmatpush.bf16.msra.mxu0 0
    %364 = vmatpush.bf16.msra.mxu0 0
    %365 = vmatpush.bf16.msra.mxu0 0
    %366 = vmatpush.bf16.msra.mxu0 0
    %367 = vmatpush.bf16.msra.mxu0 0
    %368 = vmatpush.bf16.msra.mxu0 0
    %369 = vmatpush.bf16.msra.mxu0 0
    %370 = vmatpush.bf16.msra.mxu0 %v359
    %371 = vmatmul.bf16.gmra.mxu0 %v361
    %v372 = vpop.f32.mrf.mxu0
    %v373 = vadd.f32 0.0, %v372
    %v374 = vpop.f32.mrf.mxu0
    %375 = vdwg.mxu0
    %376 = vst [vmem:[#allocation11] sm:$0xff] %v373
    // Predicated region
    $region34: #{cross_attention_learnable.1} parent=1 // pred_check
      _
    $region35: #{cross_attention_learnable.1} parent=1 // pred_check_branch
      %378 = sbr.rel (0) target = $region37
    $region36: #{cross_attention_learnable.1} parent=1 // pred_region
      %380 = vsyncadd [#allocation5], 0
      %s382 = sshll.u32 [#allocation11], 4
      %s383 = int_to_ptr.vmem [resolvable:$true] %s382
      %s384 = sshll.u32 %s4, 4
      %s385 = int_to_ptr.hbm [resolvable:$true] %s384
      %387 = dma.vmem_to_hbm [thread:$0]  %s383, 128, %s385, [#allocation5]
    $region37: #{cross_attention_learnable.1} parent=1 // pred_fallthru
      _
    // Predicated region
    $region38: #{cross_attention_learnable.1} parent=1 // pred_check
      _
    $region39: #{cross_attention_learnable.1} parent=1 // pred_check_branch
      %389 = sbr.rel (0) target = $region41
    $region40: #{cross_attention_learnable.1} parent=1 // pred_region
      %391 = dma.done [#allocation5], 128
    $region41: #{cross_attention_learnable.1} parent=1 // pred_fallthru
      _
    %392 = vsyncpa [#allocation4], 1
    %393 = vsyncpa [#allocation7], 1
    %394 = vsyncpa [#allocation10], 1
    %395 = vsyncpa [#allocation5], 1

</llo_original>
